<compile_context>
chip_gen: v5e
topology: v5e:2x2
jax: 0.10.0
libtpu: 0.0.40
codegen_flags: <defaults>
</compile_context>

<pallas_src>
import functools

import jax
import jax.numpy as jnp
from jax.experimental import pallas as pl
from jax.experimental.pallas import tpu as pltpu

LANES = 128
TARGET_BYTES_PER_INPUT = 2 * 1024 * 1024   # per-input per-grid-step DMA target
STRIP_ROWS = 1024                          # rows per in-kernel strip


def _wmse_kernel(w_ref, pred_ref, tgt_ref, acc_ref, *, tile_rows, strip_rows,
                 tiles_per_core, total_rows, needs_mask):
    """Accumulate sum((pred - tgt)^2 * mask) into a per-core (8,128) block.

    w_ref    : (1,) f32 SMEM scalar (the weight), via scalar prefetch
    pred_ref : (tile_rows, LANES) model-output tile (native dtype)
    tgt_ref  : (tile_rows, LANES) target tile (native dtype)
    acc_ref  : (8, LANES) f32 output block; resident across the inner
               ("arbitrary") grid axis, so it acts as the accumulator.
    """
    i = pl.program_id(1)          # reduction ("arbitrary") axis

    @pl.when(i == 0)
    def _():
        acc_ref[...] = jnp.zeros_like(acc_ref)

    w = w_ref[0]
    n_strips = tile_rows // strip_rows

    def accum_strip(s, masked, block_start):
        r0 = s * strip_rows
        if not isinstance(r0, int):
            r0 = pl.multiple_of(r0, strip_rows)
        p = pred_ref[pl.ds(r0, strip_rows), :].astype(jnp.float32)
        t = tgt_ref[pl.ds(r0, strip_rows), :].astype(jnp.float32)
        # mask = weight where target != 0 else 1.0 (PyTorch module semantics)
        m = jnp.where(t != 0.0, w, jnp.float32(1.0))
        d = p - t
        wgt = d * d * m
        if masked:
            # Rows past the logical end of the (rows, 128) slab come from
            # block padding (unspecified data) -> select them to 0.
            row = jax.lax.broadcasted_iota(jnp.int32, (strip_rows, LANES), 0)
            wgt = jnp.where(block_start + r0 + row < total_rows, wgt, 0.0)
        # VPU-only partial reduction: fold strip_rows/8 (8,128) vregs into acc.
        acc_ref[...] += wgt.reshape(strip_rows // 8, 8, LANES).sum(axis=0)

    def run_strips(masked, block_start=0):
        if n_strips == 1:
            accum_strip(0, masked, block_start)
        else:
            @pl.loop(0, n_strips)
            def _(s):
                accum_strip(s, masked, block_start)

    if needs_mask:
        gb = pl.program_id(0) * tiles_per_core + i       # logical block index
        block_start = gb * tile_rows
        interior = block_start + tile_rows <= total_rows

        @pl.when(interior)                  # steady state: no mask overhead
        def _():
            run_strips(False)

        @pl.when(jnp.logical_not(interior)) # tail (and clamped duplicate) block
        def _():
            run_strips(True, block_start)
    else:
        run_strips(False)


def _tensorcores_per_device():
    # Only v7x exposes 2 TensorCores per Pallas device; v5e/v6e have 1.
    try:
        kind = jax.devices()[0].device_kind.lower()
    except Exception:
        return 1
    return 2 if ("v7" in kind or "7x" in kind) else 1


def _sublane_multiple(dt):
    return 8 * max(1, 4 // jnp.dtype(dt).itemsize)


def weighted_mse_loss(output, target, weight=10.0):
    """JAX/Pallas equivalent of WeightedMSELoss.forward. Returns a scalar f32."""
    assert output.shape == target.shape
    n = int(output.size)
    assert n > 0

    # NOTE: ravel is free only for contiguous row-major inputs.
    out_flat = jnp.ravel(output)
    tgt_flat = jnp.ravel(target)

    itemsize = max(jnp.dtype(out_flat.dtype).itemsize,
                   jnp.dtype(tgt_flat.dtype).itemsize)
    sm = max(_sublane_multiple(out_flat.dtype), _sublane_multiple(tgt_flat.dtype))

    # ~2 MiB of DMA per input per grid step: 4096 rows f32, 8192 bf16, ...
    big_tile_rows = TARGET_BYTES_PER_INPUT // (LANES * itemsize)

    rows_needed = pl.cdiv(n, LANES)
    if rows_needed > big_tile_rows:
        # Large input: fixed big tile, uneven last block handled by the
        # in-kernel tail mask (gated off the steady-state path).
        tile_rows = big_tile_rows
        rows = rows_needed
    else:
        # Small input: a single full-size block, rows rounded to the sublane multiple.
        rows = pl.cdiv(rows_needed, sm) * sm
        tile_rows = rows

    pad_to = rows * LANES
    if pad_to != n:
        # Rare path (flat size not a multiple of 128, or tiny input): zero-pad.
        # Padding contributes diff = 0 with mask = 1; we divide by the original n.
        out_flat = jnp.pad(out_flat, (0, pad_to - n))
        tgt_flat = jnp.pad(tgt_flat, (0, pad_to - n))

    out2d = out_flat.reshape(rows, LANES)
    tgt2d = tgt_flat.reshape(rows, LANES)

    strip_rows = STRIP_ROWS if tile_rows % STRIP_ROWS == 0 else tile_rows

    n_tiles = pl.cdiv(rows, tile_rows)
    n_par = min(_tensorcores_per_device(), n_tiles)
    tiles_per_core = pl.cdiv(n_tiles, n_par)
    needs_mask = n_par * tiles_per_core * tile_rows != rows
    last_block = n_tiles - 1

    def in_map(c, i, w_ref):
        # Clamp so a core's trailing (fully out-of-range) logical blocks never
        # issue an OOB DMA; their contribution is zeroed by the in-kernel mask.
        return (jnp.minimum(c * tiles_per_core + i, last_block), 0)

    kernel = functools.partial(
        _wmse_kernel, tile_rows=tile_rows, strip_rows=strip_rows,
        tiles_per_core=tiles_per_core, total_rows=rows, needs_mask=needs_mask)

    if n_par > 1:
        # v7x: actually shard the reduction across both TensorCores.
        dim_sem = (pltpu.CORE_PARALLEL, pltpu.ARBITRARY)
    else:
        dim_sem = ("arbitrary", "arbitrary")

    cost = pl.CostEstimate(
        flops=6 * n,
        transcendentals=0,
        bytes_accessed=n * (jnp.dtype(out2d.dtype).itemsize
                            + jnp.dtype(tgt2d.dtype).itemsize)
        + n_par * 8 * LANES * 4)

    w_arr = jnp.asarray(weight, dtype=jnp.float32).reshape((1,))

    partials = pl.pallas_call(
        kernel,
        out_shape=jax.ShapeDtypeStruct((n_par * 8, LANES), jnp.float32),
        grid_spec=pltpu.PrefetchScalarGridSpec(
            num_scalar_prefetch=1,
            grid=(n_par, tiles_per_core),
            in_specs=[
                pl.BlockSpec((tile_rows, LANES), in_map),
                pl.BlockSpec((tile_rows, LANES), in_map),
            ],
            out_specs=pl.BlockSpec((8, LANES), lambda c, i, w_ref: (c, 0)),
        ),
        compiler_params=pltpu.CompilerParams(
            dimension_semantics=dim_sem,
            vmem_limit_bytes=32 * 1024 * 1024,
        ),
        cost_estimate=cost,
    )(w_arr, out2d, tgt2d)

    # Tiny epilogue reduce (<= n_par * 1024 f32 values) + mean in the wrapper.
    return jnp.sum(partials) / jnp.float32(n)


def _ref_loss(output, target, weight):
    o = output.astype(jnp.float32)
    t = target.astype(jnp.float32)
    mask = jnp.where(t != 0.0, jnp.float32(weight), jnp.float32(1.0))
    return jnp.mean((o - t) ** 2 * mask)


if __name__ == "__main__":
    key = jax.random.PRNGKey(0)
    k1, k2, k3 = jax.random.split(key, 3)
    weight = 10.0

    # --- Test 1: small NCHW f32 (segmentation-style loss) ---
    shape = (2, 4, 16, 16)
    output = jax.random.normal(k1, shape, dtype=jnp.float32)
    target = jax.random.normal(k2, shape, dtype=jnp.float32)
    zero_mask = jax.random.bernoulli(k3, p=0.6, shape=shape)
    target = jnp.where(zero_mask, 0.0, target)

    loss = jax.block_until_ready(weighted_mse_loss(output, target, weight=weight))
    ref = _ref_loss(output, target, weight)
    assert jnp.allclose(loss, ref, rtol=1e-5, atol=1e-6), (loss, ref)

    # --- Test 1b: different runtime weight (no recompile; weight is an SMEM scalar) ---
    loss_w3 = jax.block_until_ready(weighted_mse_loss(output, target, weight=3.0))
    ref_w3 = _ref_loss(output, target, 3.0)
    assert jnp.allclose(loss_w3, ref_w3, rtol=1e-5, atol=1e-6), (loss_w3, ref_w3)

    # --- Test 2: same data as bf16 (streams bf16, casts to f32 in-kernel) ---
    out_b = output.astype(jnp.bfloat16)
    tgt_b = target.astype(jnp.bfloat16)
    loss_b = jax.block_until_ready(weighted_mse_loss(out_b, tgt_b, weight=weight))
    ref_b = _ref_loss(out_b, tgt_b, weight)
    assert jnp.allclose(loss_b, ref_b, rtol=1e-4, atol=1e-5), (loss_b, ref_b)

    # --- Test 3: medium input exercising the big-tile / masked-tail path ---
    shape3 = (2, 4, 513, 128)   # 525312 elems -> 4104 rows > 4096-row tile
    o3 = jax.random.normal(jax.random.PRNGKey(1), shape3, dtype=jnp.float32)
    t3 = jax.random.normal(jax.random.PRNGKey(2), shape3, dtype=jnp.float32)
    z3 = jax.random.bernoulli(jax.random.PRNGKey(3), p=0.5, shape=shape3)
    t3 = jnp.where(z3, 0.0, t3)
    loss3 = jax.block_until_ready(weighted_mse_loss(o3, t3, weight=weight))
    ref3 = _ref_loss(o3, t3, weight)
    assert jnp.allclose(loss3, ref3, rtol=1e-4, atol=1e-5), (loss3, ref3)

    # --- Test 4: odd size (not a multiple of 128) exercising the pad path ---
    shape4 = (3, 5, 7)
    o4 = jax.random.normal(jax.random.PRNGKey(4), shape4, dtype=jnp.float32)
    t4 = jax.random.normal(jax.random.PRNGKey(5), shape4, dtype=jnp.float32)
    t4 = jnp.where(jax.random.bernoulli(jax.random.PRNGKey(6), 0.5, shape4), 0.0, t4)
    loss4 = jax.block_until_ready(weighted_mse_loss(o4, t4, weight=weight))
    ref4 = _ref_loss(o4, t4, weight)
    assert jnp.allclose(loss4, ref4, rtol=1e-5, atol=1e-6), (loss4, ref4)

    print("KERNEL_OK")
</pallas_src>

<mosaic_0001>
module attributes {stable_mosaic.version = 11 : i64} {
  func.func @_wmse_kernel(%arg0: i32, %arg1: i32, %arg2: memref<1xf32, #tpu.memory_space<smem>>, %arg3: memref<16x128xf32, #tpu.memory_space<vmem>>, %arg4: memref<16x128xf32, #tpu.memory_space<vmem>>, %arg5: memref<8x128xf32, #tpu.memory_space<vmem>>) attributes {dimension_semantics = [#tpu.dimension_semantics<arbitrary>, #tpu.dimension_semantics<arbitrary>], iteration_bounds = array<i64: 1, 1>, scalar_prefetch = 1 : i64, scratch_operands = 0 : i64, tpu.core_type = #tpu.core_type<tc>, window_params = [{transform_indices = @transform_0, window_bounds = array<i64: 16, 128>}, {transform_indices = @transform_1, window_bounds = array<i64: 16, 128>}, {transform_indices = @transform_2, window_bounds = array<i64: 8, 128>}]} {
    %c0_i32 = arith.constant 0 : i32
    %0 = arith.cmpi eq, %arg1, %c0_i32 : i32
    %1 = arith.extui %0 : i1 to i32
    %c0_i32_0 = arith.constant 0 : i32
    %2 = arith.cmpi ne, %1, %c0_i32_0 : i32
    scf.if %2 {
      %cst_11 = arith.constant 0.000000e+00 : f32
      %19 = vector.broadcast %cst_11 : f32 to vector<8x128xf32>
      %c0_12 = arith.constant 0 : index
      %c0_13 = arith.constant 0 : index
      %20 = vector.load %arg5[%c0_12, %c0_13] : memref<8x128xf32, #tpu.memory_space<vmem>>, vector<8x128xf32>
      tpu.vector_store %arg5[%c0_12, %c0_13], %19 {strides = array<i32>} : memref<8x128xf32, #tpu.memory_space<vmem>>, vector<8x128xf32>,
    } else {
    }
    %c0 = arith.constant 0 : index
    %3 = memref.load %arg2[%c0] : memref<1xf32, #tpu.memory_space<smem>>
    %c0_1 = arith.constant 0 : index
    %c0_2 = arith.constant 0 : index
    %4 = vector.load %arg3[%c0_1, %c0_2] : memref<16x128xf32, #tpu.memory_space<vmem>>, vector<16x128xf32>
    %c0_3 = arith.constant 0 : index
    %c0_4 = arith.constant 0 : index
    %5 = vector.load %arg4[%c0_3, %c0_4] : memref<16x128xf32, #tpu.memory_space<vmem>>, vector<16x128xf32>
    %cst = arith.constant 0.000000e+00 : f32
    %6 = vector.broadcast %cst : f32 to vector<16x128xf32>
    %7 = arith.cmpf one, %5, %6 : vector<16x128xf32>
    %cst_5 = arith.constant 1.000000e+00 : f32
    %8 = vector.broadcast %3 : f32 to vector<16x128xf32>
    %9 = vector.broadcast %cst_5 : f32 to vector<16x128xf32>
    %10 = arith.select %7, %8, %9 : vector<16x128xi1>, vector<16x128xf32>
    %11 = arith.subf %4, %5 : vector<16x128xf32>
    %12 = arith.mulf %11, %11 : vector<16x128xf32>
    %13 = arith.mulf %12, %10 : vector<16x128xf32>
    %c0_6 = arith.constant 0 : index
    %c0_7 = arith.constant 0 : index
    %14 = vector.load %arg5[%c0_6, %c0_7] : memref<8x128xf32, #tpu.memory_space<vmem>>, vector<8x128xf32>
    %15 = vector.shape_cast %13 : vector<16x128xf32> to vector<2x8x128xf32>
    %cst_8 = arith.constant dense<0.000000e+00> : vector<8x128xf32>
    %16 = vector.multi_reduction <add>, %15, %cst_8 [0] : vector<2x8x128xf32> to vector<8x128xf32>
    %17 = arith.addf %14, %16 : vector<8x128xf32>
    %c0_9 = arith.constant 0 : index
    %c0_10 = arith.constant 0 : index
    %18 = vector.load %arg5[%c0_9, %c0_10] : memref<8x128xf32, #tpu.memory_space<vmem>>, vector<8x128xf32>
    tpu.vector_store %arg5[%c0_9, %c0_10], %17 {strides = array<i32>} : memref<8x128xf32, #tpu.memory_space<vmem>>, vector<8x128xf32>,
    return
  }
  func.func @transform_0(%arg0: i32, %arg1: i32, %arg2: memref<1xf32, #tpu.memory_space<smem>>) -> (i32, i32) {
    %c1_i32 = arith.constant 1 : i32
    %0 = arith.muli %arg0, %c1_i32 : i32
    %1 = arith.addi %0, %arg1 : i32
    %c0_i32 = arith.constant 0 : i32
    %2 = arith.minsi %1, %c0_i32 : i32
    %c0_i32_0 = arith.constant 0 : i32
    %c0_i32_1 = arith.constant 0 : i32
    return %2, %c0_i32_0 : i32, i32
  }
  func.func @transform_1(%arg0: i32, %arg1: i32, %arg2: memref<1xf32, #tpu.memory_space<smem>>) -> (i32, i32) {
    %c1_i32 = arith.constant 1 : i32
    %0 = arith.muli %arg0, %c1_i32 : i32
    %1 = arith.addi %0, %arg1 : i32
    %c0_i32 = arith.constant 0 : i32
    %2 = arith.minsi %1, %c0_i32 : i32
    %c0_i32_0 = arith.constant 0 : i32
    %c0_i32_1 = arith.constant 0 : i32
    return %2, %c0_i32_0 : i32, i32
  }
  func.func @transform_2(%arg0: i32, %arg1: i32, %arg2: memref<1xf32, #tpu.memory_space<smem>>) -> (i32, i32) {
    %c0_i32 = arith.constant 0 : i32
    %c0_i32_0 = arith.constant 0 : i32
    return %arg0, %c0_i32 : i32, i32
  }
}

</mosaic_0001>

<llo_original>
// kernel: tpu_custom_call.1
$region0: #{tpu_custom_call.1}
  #allocation0 [shape = 'u32[]', space=smem, size = 0x4, offset = 0x4, fixed_abs, tag = 'smem constant byte address 0x4 - core index']
  #allocation1 [shape = 'u32[72,128]{1,0:T(1,128)}', space=vmem, size = 0x9000, scoped, tag = 'internal scratch']
  #allocation2 [shape = 's32[1]{0}', space=sflag, size = 0x4, scoped, tag = 'scoped memory for tpu_custom_call.1']
  #allocation3 [shape = 'f32[1]{0:T(128)S(6)}', space=smem, size = 0x200, scoped, tag = 'prefetched SMEM operand 0']
  %s0 = inlined_call_operand.<no memory space> [shape: f32[1], index: 0, kind: input, shape index: {}]
  %s1 = inlined_call_operand.hbm [shape: f32[16,128], index: 1, kind: input, shape index: {}]
  %s2 = inlined_call_operand.hbm [shape: f32[16,128], index: 2, kind: input, shape index: {}]
  %s3 = inlined_call_operand.hbm [shape: f32[8,128], index: 3, kind: output, shape index: {}]
  %s4 = sld [smem:[#allocation0]]
  $region30: #{tpu_custom_call.1} parent=0
    _
  %s6 = ssub.s32 1, %s4
  %s7 = scalar_select 0, %s6, %s4
  %8 = sst [smem:[#allocation3]] %s0
  $region1: #{tpu_custom_call.1} parent=0
    #allocation4 [shape = 'u8[8192]{0}', space=vmem, size = 0x2000, scoped, tag = 'input window, operand 1, single buffered']
    #allocation5 [shape = 's32[1]{0}', space=sflag, size = 0x4, scoped, tag = 'scoped memory for tpu_custom_call.1']
    #allocation6 [shape = 's32[1]{0}', space=sflag, size = 0x4, scoped, tag = 'scoped memory for tpu_custom_call.1']
    #allocation7 [shape = 'u8[8192]{0}', space=vmem, size = 0x2000, scoped, tag = 'input window, operand 2, single buffered']
    #allocation8 [shape = 's32[1]{0}', space=sflag, size = 0x4, scoped, tag = 'scoped memory for tpu_custom_call.1']
    #allocation9 [shape = 'u8[4096]{0}', space=vmem, size = 0x1000, scoped, tag = 'output window, operand 0, single buffered']
    %9 = vsyncpa [#allocation5], 0
    %10 = vsyncpa [#allocation8], 0
    %11 = vsyncpa [#allocation6], 0
    // Predicated region
    $region2: #{tpu_custom_call.1} parent=1 // pred_check
      _
    $region3: #{tpu_custom_call.1} parent=1 // pred_check_branch
      %13 = sbr.rel (0) target = $region5
    $region4: #{tpu_custom_call.1} parent=1 // pred_region
      %s14 = sadd.s32 0, 0
      %p15 = scmp.lt.s32.totalorder %s14, 0
      %s16 = scalar_select %p15, %s14, 0
      %s17 = smul.u32 2, %s16
      %19 = vsyncadd [#allocation5], 0
      %s20 = smul.addr %s17, 8
      %s21 = scalar_lea.hbm %s1, %s20
      %s22 = sshll.u32 %s21, 4
      %s23 = int_to_ptr.hbm [resolvable:$true] %s22
      %s24 = sshll.u32 [#allocation4], 4
      %s25 = int_to_ptr.vmem [resolvable:$true] %s24
      %30 = dma.hbm_to_vmem [thread:$0]  %s23, 256, %s25, [#allocation5], 128, 128, 8
    $region5: #{tpu_custom_call.1} parent=1 // pred_fallthru
      _
    // Predicated region
    $region6: #{tpu_custom_call.1} parent=1 // pred_check
      _
    $region7: #{tpu_custom_call.1} parent=1 // pred_check_branch
      %32 = sbr.rel (0) target = $region9
    $region8: #{tpu_custom_call.1} parent=1 // pred_region
      %s33 = sadd.s32 0, 0
      %p34 = scmp.lt.s32.totalorder %s33, 0
      %s35 = scalar_select %p34, %s33, 0
      %s36 = smul.u32 2, %s35
      %38 = vsyncadd [#allocation8], 0
      %s39 = smul.addr %s36, 8
      %s40 = scalar_lea.hbm %s2, %s39
      %s41 = sshll.u32 %s40, 4
      %s42 = int_to_ptr.hbm [resolvable:$true] %s41
      %s43 = sshll.u32 [#allocation7], 4
      %s44 = int_to_ptr.vmem [resolvable:$true] %s43
      %49 = dma.hbm_to_vmem [thread:$0]  %s42, 256, %s44, [#allocation8], 128, 128, 8
    $region9: #{tpu_custom_call.1} parent=1 // pred_fallthru
      _
    // Predicated region
    $region10: #{tpu_custom_call.1} parent=1 // pred_check
      _
    $region11: #{tpu_custom_call.1} parent=1 // pred_check_branch
      %51 = sbr.rel (0) target = $region13
    $region12: #{tpu_custom_call.1} parent=1 // pred_region
      %53 = dma.done [#allocation5], 256
    $region13: #{tpu_custom_call.1} parent=1 // pred_fallthru
      _
    // Predicated region
    $region14: #{tpu_custom_call.1} parent=1 // pred_check
      _
    $region15: #{tpu_custom_call.1} parent=1 // pred_check_branch
      %55 = sbr.rel (0) target = $region17
    $region16: #{tpu_custom_call.1} parent=1 // pred_region
      %57 = dma.done [#allocation8], 256
    $region17: #{tpu_custom_call.1} parent=1 // pred_fallthru
      _
    %s58 = sadd.s32 0, 0
    %p59 = scmp.lt.s32.totalorder %s58, 0
    %s60 = scalar_select %p59, %s58, 0
    %s61 = smul.u32 2, %s60
    %s62 = sadd.s32 0, 0
    %p63 = scmp.lt.s32.totalorder %s62, 0
    %s64 = scalar_select %p63, %s62, 0
    %s65 = smul.u32 2, %s64
    %p66 = scmp.eq.s32.totalorder 0, 0
    // Predicated region
    $region18: #{tpu_custom_call.1} parent=1 // pred_check
      %p67 = pneg %p66
    $region19: #{tpu_custom_call.1} parent=1 // pred_check_branch
      %69 = sbr.rel (%p67) target = $region21
    $region20: #{tpu_custom_call.1} parent=1 // pred_region
      %70 = vst [vmem:[#allocation9] sm:$0xff] 0.0
    $region21: #{tpu_custom_call.1} parent=1 // pred_fallthru
      _
    %s71 = sld [smem:[#allocation3]]
    %v72 = vld [vmem:[#allocation4] sm:$0xff]
    %v73 = vld [vmem:[#allocation4 + $0x8] sm:$0xff]
    %v74 = vld [vmem:[#allocation7] sm:$0xff]
    %v75 = vld [vmem:[#allocation7 + $0x8] sm:$0xff]
    %vm76 = vcmp.ne.f32.partialorder %v74, 0.0
    %vm77 = vcmp.ne.f32.partialorder %v75, 0.0
    %v78 = vstv %s71
    %v79 = vsel %vm76, %v78, 1.0
    %v80 = vsel %vm77, %v78, 1.0
    %v81 = vsub.f32 %v72, %v74
    %v82 = vsub.f32 %v73, %v75
    %v83 = vmul.f32 %v81, %v81
    %v84 = vmul.f32 %v82, %v82
    %v85 = vmul.f32 %v83, %v79
    %v86 = vmul.f32 %v84, %v80
    %v87 = vld [vmem:[#allocation9] sm:$0xff]
    %v88 = vadd.f32 %v85, %v86
    %v89 = vadd.f32 %v87, %v88
    %90 = vst [vmem:[#allocation9] sm:$0xff] %v89
    // Predicated region
    $region22: #{tpu_custom_call.1} parent=1 // pred_check
      _
    $region23: #{tpu_custom_call.1} parent=1 // pred_check_branch
      %92 = sbr.rel (0) target = $region25
    $region24: #{tpu_custom_call.1} parent=1 // pred_region
      %94 = vsyncadd [#allocation6], 0
      %s96 = sshll.u32 [#allocation9], 4
      %s97 = int_to_ptr.vmem [resolvable:$true] %s96
      %s98 = sshll.u32 %s3, 4
      %s99 = int_to_ptr.hbm [resolvable:$true] %s98
      %101 = dma.vmem_to_hbm [thread:$0]  %s97, 128, %s99, [#allocation6]
    $region25: #{tpu_custom_call.1} parent=1 // pred_fallthru
      _
    // Predicated region
    $region26: #{tpu_custom_call.1} parent=1 // pred_check
      _
    $region27: #{tpu_custom_call.1} parent=1 // pred_check_branch
      %103 = sbr.rel (0) target = $region29
    $region28: #{tpu_custom_call.1} parent=1 // pred_region
      %105 = dma.done [#allocation6], 128
    $region29: #{tpu_custom_call.1} parent=1 // pred_fallthru
      _
    %106 = vsyncpa [#allocation5], 1
    %107 = vsyncpa [#allocation8], 1
    %108 = vsyncpa [#allocation6], 1

</llo_original>
